<compile_context>
chip_gen: v7x
topology: tpu7x:2x2x1
jax: 0.10.0
libtpu: 0.0.40
codegen_flags: <defaults>
</compile_context>

<pallas_src>
import functools

import jax
import jax.numpy as jnp
from jax.experimental import pallas as pl
from jax.experimental.pallas import tpu as pltpu


def _round_up(x, m):
    return ((x + m - 1) // m) * m


def _mlp_kernel(x_ref, *refs, relu_flags):
    """Fused per-row MLP chain: (matmul + bias [+ ReLU]) per layer, in VMEM."""
    out_ref = refs[-1]
    param_refs = refs[:-1]
    h = x_ref[...]                                      # (row_tile, in), f32
    for li, apply_relu in enumerate(relu_flags):
        w = param_refs[2 * li][...]                     # (in_k, out_k), f32
        b = param_refs[2 * li + 1][...]                 # (1, out_k),    f32
        h = jnp.dot(h, w, preferred_element_type=jnp.float32) + b
        if apply_relu:
            h = jnp.maximum(h, 0.0)
    out_ref[...] = h.astype(out_ref.dtype)


def custom_relu_net_forward(x, weights, biases, relu_flags, *, row_tile=8192):
    """x: (batch, seq, input_size). weights[k]: (in_k, out_k). biases[k]: (out_k,)."""
    batch, seq, in_size = x.shape
    rows = batch * seq
    out_size = weights[-1].shape[1]
    itemsize = 4  # f32 everywhere

    # --- Row-tile selection -------------------------------------------------
    rows_aligned = _round_up(rows, 8)
    # 256 fills the MXU M dim on v6e/v7x for large inputs; an 8-sublane
    # quantum otherwise (also the natural granularity on v5e's 128-wide MXU).
    quantum = 256 if rows_aligned >= 512 else 8
    row_tile = _round_up(min(row_tile, rows_aligned), quantum)
    # Keep >= 2 grid steps whenever possible so v7x's 2 TensorCores both get
    # work under dimension_semantics=("parallel",).
    if rows_aligned >= 2 * quantum:
        row_tile = min(row_tile, _round_up(pl.cdiv(rows_aligned, 2), quantum))
    grid = (pl.cdiv(rows, row_tile),)

    # Metadata-only reshape: no extra HBM pass over x.
    x2d = x.reshape(rows, in_size)

    params = []
    for w, b in zip(weights, biases):
        params.append(w.astype(jnp.float32))
        params.append(b.reshape(1, -1).astype(jnp.float32))

    in_specs = [pl.BlockSpec((row_tile, in_size), lambda i: (i, 0))]
    for w, b in zip(weights, biases):
        # Grid-invariant params: constant index_map -> fetched once per call.
        in_specs.append(pl.BlockSpec(w.shape, lambda i: (0, 0)))
        in_specs.append(pl.BlockSpec((1, b.shape[0]), lambda i: (0, 0)))

    out_shape = jax.ShapeDtypeStruct((rows, out_size), jnp.float32)
    out_spec = pl.BlockSpec((row_tile, out_size), lambda i: (i, 0))

    # VMEM footprint: double-buffered x/out blocks + params + live intermediates.
    max_width = max([in_size] + [w.shape[1] for w in weights])
    vmem_bytes = (2 * row_tile * in_size * itemsize        # x, double-buffered
                  + 2 * row_tile * out_size * itemsize     # out, double-buffered
                  + sum(int(p.size) * itemsize for p in params)
                  + 3 * row_tile * max_width * itemsize)   # live intermediates
    vmem_limit = int(min(max(2 * vmem_bytes, 8 * 1024 * 1024), 32 * 1024 * 1024))

    flops = 2 * rows * sum(w.shape[0] * w.shape[1] for w in weights)
    bytes_accessed = (rows * in_size * itemsize
                      + sum(int(p.size) * itemsize for p in params)
                      + rows * out_size * itemsize)

    kernel = functools.partial(_mlp_kernel, relu_flags=tuple(relu_flags))

    out = pl.pallas_call(
        kernel,
        out_shape=out_shape,
        grid_spec=pltpu.PrefetchScalarGridSpec(
            num_scalar_prefetch=0,
            grid=grid,
            in_specs=in_specs,
            out_specs=out_spec,
        ),
        compiler_params=pltpu.CompilerParams(
            dimension_semantics=("parallel",),
            vmem_limit_bytes=vmem_limit,
        ),
        cost_estimate=pl.CostEstimate(flops=flops, transcendentals=0,
                                      bytes_accessed=bytes_accessed),
    )(x2d, *params)

    return out.reshape(batch, seq, out_size)


def build_params(key, input_size, hidden_size, output_size,
                 hidden_layers, output_layers):
    """Deterministic init matching the module's layer shapes.

    weight ~ N(0, sqrt(2/in)) (init_weights); bias ~ U(-1/sqrt(in), 1/sqrt(in))
    (PyTorch Linear default bias init). Weights returned as (in, out).
    """
    sizes_in, sizes_out, relu_flags = [], [], []
    layer_in = input_size
    for h in list(hidden_layers) + [hidden_size]:          # head
        sizes_in.append(layer_in); sizes_out.append(h); relu_flags.append(True)
        layer_in = h
    # extra nn.ReLU() after head is idempotent (head already ends in ReLU).
    for o in output_layers:                                # tail
        sizes_in.append(layer_in); sizes_out.append(o); relu_flags.append(True)
        layer_in = o
    sizes_in.append(layer_in); sizes_out.append(output_size)  # fc (no ReLU)
    relu_flags.append(False)

    weights, biases = [], []
    for fan_in, fan_out in zip(sizes_in, sizes_out):
        key, kw, kb = jax.random.split(key, 3)
        stdev = (2.0 / fan_in) ** 0.5
        w = jax.random.normal(kw, (fan_in, fan_out), jnp.float32) * stdev
        bound = 1.0 / (fan_in ** 0.5)
        b = jax.random.uniform(kb, (fan_out,), jnp.float32, -bound, bound)
        weights.append(w)
        biases.append(b)
    return weights, biases, relu_flags


def reference_forward(x, weights, biases, relu_flags):
    """Pure-JAX f32 reference (matches the PyTorch module semantics)."""
    b, s, d = x.shape
    h = x.reshape(b * s, d).astype(jnp.float32)
    for w, bi, r in zip(weights, biases, relu_flags):
        h = jnp.dot(h, w, preferred_element_type=jnp.float32) + bi
        if r:
            h = jnp.maximum(h, 0.0)
    return h.reshape(b, s, -1)


if __name__ == "__main__":
    input_size, hidden_size, output_size = 8, 32, 4
    hidden_layers, output_layers = [32], [16]

    key = jax.random.PRNGKey(0)
    key, kp = jax.random.split(key)
    weights, biases, relu_flags = build_params(
        kp, input_size, hidden_size, output_size, hidden_layers, output_layers)

    # Case 1: canonical small shape (batch=2, seq=8) -> even grid split.
    # Case 2: non-divisible row count (batch=3, seq=7 -> 21 rows) -> exercises
    #         the partial last block / discarded out-of-bounds output rows.
    for batch, seq in [(2, 8), (3, 7)]:
        key, kx = jax.random.split(key)
        x = jax.random.normal(kx, (batch, seq, input_size), jnp.float32)

        out = jax.block_until_ready(
            custom_relu_net_forward(x, weights, biases, relu_flags))
        ref = reference_forward(x, weights, biases, relu_flags)

        assert out.shape == (batch, seq, output_size)
        max_err = float(jnp.max(jnp.abs(out - ref)))
        assert jnp.allclose(out, ref, atol=5e-3, rtol=5e-3), max_err

    print("KERNEL_OK")
</pallas_src>

<mosaic_0001>
module attributes {stable_mosaic.version = 11 : i64} {
  func.func @_mlp_kernel(%arg0: i32, %arg1: memref<8x8xf32, #tpu.memory_space<vmem>>, %arg2: memref<8x32xf32, #tpu.memory_space<vmem>>, %arg3: memref<1x32xf32, #tpu.memory_space<vmem>>, %arg4: memref<32x32xf32, #tpu.memory_space<vmem>>, %arg5: memref<1x32xf32, #tpu.memory_space<vmem>>, %arg6: memref<32x16xf32, #tpu.memory_space<vmem>>, %arg7: memref<1x16xf32, #tpu.memory_space<vmem>>, %arg8: memref<16x4xf32, #tpu.memory_space<vmem>>, %arg9: memref<1x4xf32, #tpu.memory_space<vmem>>, %arg10: memref<8x4xf32, #tpu.memory_space<vmem>>) attributes {dimension_semantics = [#tpu.dimension_semantics<parallel>], iteration_bounds = array<i64: 2>, scalar_prefetch = 0 : i64, scratch_operands = 0 : i64, tpu.core_type = #tpu.core_type<tc>, window_params = [{transform_indices = @transform_0, window_bounds = array<i64: 8, 8>}, {pipeline_mode = #tpu.pipeline_mode<synchronous>, transform_indices = @transform_1, window_bounds = array<i64: 8, 32>}, {pipeline_mode = #tpu.pipeline_mode<synchronous>, transform_indices = @transform_2, window_bounds = array<i64: 1, 32>}, {pipeline_mode = #tpu.pipeline_mode<synchronous>, transform_indices = @transform_3, window_bounds = array<i64: 32, 32>}, {pipeline_mode = #tpu.pipeline_mode<synchronous>, transform_indices = @transform_4, window_bounds = array<i64: 1, 32>}, {pipeline_mode = #tpu.pipeline_mode<synchronous>, transform_indices = @transform_5, window_bounds = array<i64: 32, 16>}, {pipeline_mode = #tpu.pipeline_mode<synchronous>, transform_indices = @transform_6, window_bounds = array<i64: 1, 16>}, {pipeline_mode = #tpu.pipeline_mode<synchronous>, transform_indices = @transform_7, window_bounds = array<i64: 16, 4>}, {pipeline_mode = #tpu.pipeline_mode<synchronous>, transform_indices = @transform_8, window_bounds = array<i64: 1, 4>}, {transform_indices = @transform_9, window_bounds = array<i64: 8, 4>}]} {
    %c0 = arith.constant 0 : index
    %c0_0 = arith.constant 0 : index
    %0 = vector.load %arg1[%c0, %c0_0] : memref<8x8xf32, #tpu.memory_space<vmem>>, vector<8x8xf32>
    %c0_1 = arith.constant 0 : index
    %c0_2 = arith.constant 0 : index
    %1 = vector.load %arg2[%c0_1, %c0_2] : memref<8x32xf32, #tpu.memory_space<vmem>>, vector<8x32xf32>
    %c0_3 = arith.constant 0 : index
    %c0_4 = arith.constant 0 : index
    %2 = vector.load %arg3[%c0_3, %c0_4] : memref<1x32xf32, #tpu.memory_space<vmem>>, vector<1x32xf32>
    %cst = arith.constant dense<0.000000e+00> : vector<8x32xf32>
    %3 = tpu.matmul %0, %1, %cst {dimension_numbers = #tpu.dot_dimension_numbers<[1], [0], [0], [1], [0, 0, 1, 1], [], []>} : vector<8x8xf32>, vector<8x32xf32>, vector<8x32xf32> -> vector<8x32xf32>
    %4 = vector.broadcast %2 : vector<1x32xf32> to vector<8x32xf32>
    %5 = arith.addf %3, %4 : vector<8x32xf32>
    %cst_5 = arith.constant 0.000000e+00 : f32
    %6 = vector.broadcast %cst_5 : f32 to vector<8x32xf32>
    %7 = arith.maximumf %5, %6 : vector<8x32xf32>
    %c0_6 = arith.constant 0 : index
    %c0_7 = arith.constant 0 : index
    %8 = vector.load %arg4[%c0_6, %c0_7] : memref<32x32xf32, #tpu.memory_space<vmem>>, vector<32x32xf32>
    %c0_8 = arith.constant 0 : index
    %c0_9 = arith.constant 0 : index
    %9 = vector.load %arg5[%c0_8, %c0_9] : memref<1x32xf32, #tpu.memory_space<vmem>>, vector<1x32xf32>
    %cst_10 = arith.constant dense<0.000000e+00> : vector<8x32xf32>
    %10 = tpu.matmul %7, %8, %cst_10 {dimension_numbers = #tpu.dot_dimension_numbers<[1], [0], [0], [1], [0, 0, 1, 1], [], []>} : vector<8x32xf32>, vector<32x32xf32>, vector<8x32xf32> -> vector<8x32xf32>
    %11 = vector.broadcast %9 : vector<1x32xf32> to vector<8x32xf32>
    %12 = arith.addf %10, %11 : vector<8x32xf32>
    %cst_11 = arith.constant 0.000000e+00 : f32
    %13 = vector.broadcast %cst_11 : f32 to vector<8x32xf32>
    %14 = arith.maximumf %12, %13 : vector<8x32xf32>
    %c0_12 = arith.constant 0 : index
    %c0_13 = arith.constant 0 : index
    %15 = vector.load %arg6[%c0_12, %c0_13] : memref<32x16xf32, #tpu.memory_space<vmem>>, vector<32x16xf32>
    %c0_14 = arith.constant 0 : index
    %c0_15 = arith.constant 0 : index
    %16 = vector.load %arg7[%c0_14, %c0_15] : memref<1x16xf32, #tpu.memory_space<vmem>>, vector<1x16xf32>
    %cst_16 = arith.constant dense<0.000000e+00> : vector<8x16xf32>
    %17 = tpu.matmul %14, %15, %cst_16 {dimension_numbers = #tpu.dot_dimension_numbers<[1], [0], [0], [1], [0, 0, 1, 1], [], []>} : vector<8x32xf32>, vector<32x16xf32>, vector<8x16xf32> -> vector<8x16xf32>
    %18 = vector.broadcast %16 : vector<1x16xf32> to vector<8x16xf32>
    %19 = arith.addf %17, %18 : vector<8x16xf32>
    %cst_17 = arith.constant 0.000000e+00 : f32
    %20 = vector.broadcast %cst_17 : f32 to vector<8x16xf32>
    %21 = arith.maximumf %19, %20 : vector<8x16xf32>
    %c0_18 = arith.constant 0 : index
    %c0_19 = arith.constant 0 : index
    %22 = vector.load %arg8[%c0_18, %c0_19] : memref<16x4xf32, #tpu.memory_space<vmem>>, vector<16x4xf32>
    %c0_20 = arith.constant 0 : index
    %c0_21 = arith.constant 0 : index
    %23 = vector.load %arg9[%c0_20, %c0_21] : memref<1x4xf32, #tpu.memory_space<vmem>>, vector<1x4xf32>
    %cst_22 = arith.constant dense<0.000000e+00> : vector<8x4xf32>
    %24 = tpu.matmul %21, %22, %cst_22 {dimension_numbers = #tpu.dot_dimension_numbers<[1], [0], [0], [1], [0, 0, 1, 1], [], []>} : vector<8x16xf32>, vector<16x4xf32>, vector<8x4xf32> -> vector<8x4xf32>
    %25 = vector.broadcast %23 : vector<1x4xf32> to vector<8x4xf32>
    %26 = arith.addf %24, %25 : vector<8x4xf32>
    %c0_23 = arith.constant 0 : index
    %c0_24 = arith.constant 0 : index
    %27 = vector.load %arg10[%c0_23, %c0_24] : memref<8x4xf32, #tpu.memory_space<vmem>>, vector<8x4xf32>
    tpu.vector_store %arg10[%c0_23, %c0_24], %26 {strides = array<i32>} : memref<8x4xf32, #tpu.memory_space<vmem>>, vector<8x4xf32>,
    return
  }
  func.func @transform_0(%arg0: i32) -> (i32, i32) {
    %c0_i32 = arith.constant 0 : i32
    %c0_i32_0 = arith.constant 0 : i32
    return %arg0, %c0_i32 : i32, i32
  }
  func.func @transform_1(%arg0: i32) -> (i32, i32) {
    %c0_i32 = arith.constant 0 : i32
    %c0_i32_0 = arith.constant 0 : i32
    %c0_i32_1 = arith.constant 0 : i32
    return %c0_i32, %c0_i32_0 : i32, i32
  }
  func.func @transform_2(%arg0: i32) -> (i32, i32) {
    %c0_i32 = arith.constant 0 : i32
    %c0_i32_0 = arith.constant 0 : i32
    %c0_i32_1 = arith.constant 0 : i32
    return %c0_i32, %c0_i32_0 : i32, i32
  }
  func.func @transform_3(%arg0: i32) -> (i32, i32) {
    %c0_i32 = arith.constant 0 : i32
    %c0_i32_0 = arith.constant 0 : i32
    %c0_i32_1 = arith.constant 0 : i32
    return %c0_i32, %c0_i32_0 : i32, i32
  }
  func.func @transform_4(%arg0: i32) -> (i32, i32) {
    %c0_i32 = arith.constant 0 : i32
    %c0_i32_0 = arith.constant 0 : i32
    %c0_i32_1 = arith.constant 0 : i32
    return %c0_i32, %c0_i32_0 : i32, i32
  }
  func.func @transform_5(%arg0: i32) -> (i32, i32) {
    %c0_i32 = arith.constant 0 : i32
    %c0_i32_0 = arith.constant 0 : i32
    %c0_i32_1 = arith.constant 0 : i32
    return %c0_i32, %c0_i32_0 : i32, i32
  }
  func.func @transform_6(%arg0: i32) -> (i32, i32) {
    %c0_i32 = arith.constant 0 : i32
    %c0_i32_0 = arith.constant 0 : i32
    %c0_i32_1 = arith.constant 0 : i32
    return %c0_i32, %c0_i32_0 : i32, i32
  }
  func.func @transform_7(%arg0: i32) -> (i32, i32) {
    %c0_i32 = arith.constant 0 : i32
    %c0_i32_0 = arith.constant 0 : i32
    %c0_i32_1 = arith.constant 0 : i32
    return %c0_i32, %c0_i32_0 : i32, i32
  }
  func.func @transform_8(%arg0: i32) -> (i32, i32) {
    %c0_i32 = arith.constant 0 : i32
    %c0_i32_0 = arith.constant 0 : i32
    %c0_i32_1 = arith.constant 0 : i32
    return %c0_i32, %c0_i32_0 : i32, i32
  }
  func.func @transform_9(%arg0: i32) -> (i32, i32) {
    %c0_i32 = arith.constant 0 : i32
    %c0_i32_0 = arith.constant 0 : i32
    return %arg0, %c0_i32 : i32, i32
  }
}

</mosaic_0001>

<llo_original>
// kernel: tpu_custom_call.1
$region0: #{tpu_custom_call.1}
  #allocation0 [shape = 'u32[]', space=smem, size = 0x4, offset = 0x4, fixed_abs, tag = 'smem constant byte address 0x4 - core index']
  #allocation1 [shape = 'u32[144,128]{1,0:T(1,128)}', space=vmem, size = 0x12000, scoped, tag = 'internal scratch']
  %s0 = inlined_call_operand.vmem [shape: f32[16,8], index: 0, kind: input, shape index: {}]
  %s1 = inlined_call_operand.vmem [shape: f32[8,32], index: 1, kind: input, shape index: {}]
  %s2 = inlined_call_operand.vmem [shape: f32[1,32], index: 2, kind: input, shape index: {}]
  %s3 = inlined_call_operand.vmem [shape: f32[32,32], index: 3, kind: input, shape index: {}]
  %s4 = inlined_call_operand.vmem [shape: f32[1,32], index: 4, kind: input, shape index: {}]
  %s5 = inlined_call_operand.vmem [shape: f32[32,16], index: 5, kind: input, shape index: {}]
  %s6 = inlined_call_operand.vmem [shape: f32[1,16], index: 6, kind: input, shape index: {}]
  %s7 = inlined_call_operand.vmem [shape: f32[16,4], index: 7, kind: input, shape index: {}]
  %s8 = inlined_call_operand.vmem [shape: f32[1,4], index: 8, kind: input, shape index: {}]
  %s9 = inlined_call_operand.vmem [shape: f32[16,4], index: 9, kind: output, shape index: {}]
  %s10 = sld [smem:[#allocation0]]
  $region69: #{tpu_custom_call.1} parent=0
    _
  %s12 = ssub.s32 1, %s10
  %s13 = scalar_select 0, %s12, %s10
  loop: start=0, step=1, limit=4
  $region2: #{tpu_custom_call.1} parent=0 // loop_pre_header
    _
  $region3: #{tpu_custom_call.1} parent=0 // loop_header
    %s15 = sphi 0, %s19
    %p16 = scmp.ge.s32.totalorder %s15, 4
    %s25 = sphi 0, %s27
    %s28 = sphi 0, %s25
    %s29 = sphi 0, %s28
    %s45 = sphi 0, %s29
    %s49 = sphi 0, %s49
    %s51 = sphi 0, %s49
    %s52 = sphi 0, %s51
    %s66 = sphi 0, %s52
    %s70 = sphi 0, %s70
    %s72 = sphi 0, %s70
    %s73 = sphi 0, %s72
    %s87 = sphi 0, %s73
    %s91 = sphi 0, %s91
    %s93 = sphi 0, %s91
    %s94 = sphi 0, %s93
    %s108 = sphi 0, %s94
    %s112 = sphi 0, %s112
    %s114 = sphi 0, %s112
    %s115 = sphi 0, %s114
    %s129 = sphi 0, %s115
    %s133 = sphi 0, %s133
    %s135 = sphi 0, %s133
    %s136 = sphi 0, %s135
    %s150 = sphi 0, %s136
    %s154 = sphi 0, %s154
    %s156 = sphi 0, %s154
    %s157 = sphi 0, %s156
    %s171 = sphi 0, %s157
    %s175 = sphi 0, %s175
    %s177 = sphi 0, %s175
    %s178 = sphi 0, %s177
    %s192 = sphi 0, %s178
    %s196 = sphi 0, %s196
    %s198 = sphi 0, %s196
    %s199 = sphi 0, %s198
    %s213 = sphi 0, %s199
    %s219 = sphi 0, %s221
    %s222 = sphi 0, %s219
    %s223 = sphi 0, %s222
    %s239 = sphi 0, %s223
  $region4: #{tpu_custom_call.1} parent=0 // loop_header_branch
    %18 = sbr.rel (%p16) target = $region8
  $region5: #{tpu_custom_call.1} parent=0 // loop_body
    %s20 = ssub.s32 %s15, 1
    %s21 = ssub.s32 %s15, 2
    %s22 = sadd.s32 %s15, 1
    %s23 = ssub.s32 %s15, %s22
    %p24 = scmp.eq.s32.totalorder %s23, 0
    %s26 = sadd.s32 %s25, 1
    %s27 = scalar_select %p24, %s25, %s26
    %p30 = pneg %p24
    %p31 = scmp.eq.s32.totalorder %s15, 1
    %p32 = por %p30, %p31
    %p33 = scmp.ne.s32.totalorder %s25, %s28
    %p34 = scmp.eq.s32.totalorder %s15, 0
    %p35 = por %p33, %p34
    %p36 = scmp.ne.s32.totalorder %s25, %s28
    %p37 = scmp.eq.s32.totalorder %s20, 1
    %p38 = por %p36, %p37
    %p39 = scmp.ne.s32.totalorder %s28, %s29
    %p40 = scmp.eq.s32.totalorder %s20, 0
    %p41 = por %p39, %p40
    %p42 = scmp.ne.s32.totalorder %s28, %s29
    %p43 = scmp.eq.s32.totalorder %s21, 1
    %p44 = por %p42, %p43
    %p46 = scmp.ne.s32.totalorder %s29, %s45
    %p47 = scmp.eq.s32.totalorder %s21, 0
    %p48 = por %p46, %p47
    %s50 = sadd.s32 %s49, 1
    %p53 = scmp.eq.s32.totalorder %s15, 1
    %p54 = scmp.ne.s32.totalorder %s49, %s51
    %p55 = scmp.eq.s32.totalorder %s15, 0
    %p56 = por %p54, %p55
    %p57 = scmp.ne.s32.totalorder %s49, %s51
    %p58 = scmp.eq.s32.totalorder %s20, 1
    %p59 = por %p57, %p58
    %p60 = scmp.ne.s32.totalorder %s51, %s52
    %p61 = scmp.eq.s32.totalorder %s20, 0
    %p62 = por %p60, %p61
    %p63 = scmp.ne.s32.totalorder %s51, %s52
    %p64 = scmp.eq.s32.totalorder %s21, 1
    %p65 = por %p63, %p64
    %p67 = scmp.ne.s32.totalorder %s52, %s66
    %p68 = scmp.eq.s32.totalorder %s21, 0
    %p69 = por %p67, %p68
    %s71 = sadd.s32 %s70, 1
    %p74 = scmp.eq.s32.totalorder %s15, 1
    %p75 = scmp.ne.s32.totalorder %s70, %s72
    %p76 = scmp.eq.s32.totalorder %s15, 0
    %p77 = por %p75, %p76
    %p78 = scmp.ne.s32.totalorder %s70, %s72
    %p79 = scmp.eq.s32.totalorder %s20, 1
    %p80 = por %p78, %p79
    %p81 = scmp.ne.s32.totalorder %s72, %s73
    %p82 = scmp.eq.s32.totalorder %s20, 0
    %p83 = por %p81, %p82
    %p84 = scmp.ne.s32.totalorder %s72, %s73
    %p85 = scmp.eq.s32.totalorder %s21, 1
    %p86 = por %p84, %p85
    %p88 = scmp.ne.s32.totalorder %s73, %s87
    %p89 = scmp.eq.s32.totalorder %s21, 0
    %p90 = por %p88, %p89
    %s92 = sadd.s32 %s91, 1
    %p95 = scmp.eq.s32.totalorder %s15, 1
    %p96 = scmp.ne.s32.totalorder %s91, %s93
    %p97 = scmp.eq.s32.totalorder %s15, 0
    %p98 = por %p96, %p97
    %p99 = scmp.ne.s32.totalorder %s91, %s93
    %p100 = scmp.eq.s32.totalorder %s20, 1
    %p101 = por %p99, %p100
    %p102 = scmp.ne.s32.totalorder %s93, %s94
    %p103 = scmp.eq.s32.totalorder %s20, 0
    %p104 = por %p102, %p103
    %p105 = scmp.ne.s32.totalorder %s93, %s94
    %p106 = scmp.eq.s32.totalorder %s21, 1
    %p107 = por %p105, %p106
    %p109 = scmp.ne.s32.totalorder %s94, %s108
    %p110 = scmp.eq.s32.totalorder %s21, 0
    %p111 = por %p109, %p110
    %s113 = sadd.s32 %s112, 1
    %p116 = scmp.eq.s32.totalorder %s15, 1
    %p117 = scmp.ne.s32.totalorder %s112, %s114
    %p118 = scmp.eq.s32.totalorder %s15, 0
    %p119 = por %p117, %p118
    %p120 = scmp.ne.s32.totalorder %s112, %s114
    %p121 = scmp.eq.s32.totalorder %s20, 1
    %p122 = por %p120, %p121
    %p123 = scmp.ne.s32.totalorder %s114, %s115
    %p124 = scmp.eq.s32.totalorder %s20, 0
    %p125 = por %p123, %p124
    %p126 = scmp.ne.s32.totalorder %s114, %s115
    %p127 = scmp.eq.s32.totalorder %s21, 1
    %p128 = por %p126, %p127
    %p130 = scmp.ne.s32.totalorder %s115, %s129
    %p131 = scmp.eq.s32.totalorder %s21, 0
    %p132 = por %p130, %p131
    %s134 = sadd.s32 %s133, 1
    %p137 = scmp.eq.s32.totalorder %s15, 1
    %p138 = scmp.ne.s32.totalorder %s133, %s135
    %p139 = scmp.eq.s32.totalorder %s15, 0
    %p140 = por %p138, %p139
    %p141 = scmp.ne.s32.totalorder %s133, %s135
    %p142 = scmp.eq.s32.totalorder %s20, 1
    %p143 = por %p141, %p142
    %p144 = scmp.ne.s32.totalorder %s135, %s136
    %p145 = scmp.eq.s32.totalorder %s20, 0
    %p146 = por %p144, %p145
    %p147 = scmp.ne.s32.totalorder %s135, %s136
    %p148 = scmp.eq.s32.totalorder %s21, 1
    %p149 = por %p147, %p148
    %p151 = scmp.ne.s32.totalorder %s136, %s150
    %p152 = scmp.eq.s32.totalorder %s21, 0
    %p153 = por %p151, %p152
    %s155 = sadd.s32 %s154, 1
    %p158 = scmp.eq.s32.totalorder %s15, 1
    %p159 = scmp.ne.s32.totalorder %s154, %s156
    %p160 = scmp.eq.s32.totalorder %s15, 0
    %p161 = por %p159, %p160
    %p162 = scmp.ne.s32.totalorder %s154, %s156
    %p163 = scmp.eq.s32.totalorder %s20, 1
    %p164 = por %p162, %p163
    %p165 = scmp.ne.s32.totalorder %s156, %s157
    %p166 = scmp.eq.s32.totalorder %s20, 0
    %p167 = por %p165, %p166
    %p168 = scmp.ne.s32.totalorder %s156, %s157
    %p169 = scmp.eq.s32.totalorder %s21, 1
    %p170 = por %p168, %p169
    %p172 = scmp.ne.s32.totalorder %s157, %s171
    %p173 = scmp.eq.s32.totalorder %s21, 0
    %p174 = por %p172, %p173
    %s176 = sadd.s32 %s175, 1
    %p179 = scmp.eq.s32.totalorder %s15, 1
    %p180 = scmp.ne.s32.totalorder %s175, %s177
    %p181 = scmp.eq.s32.totalorder %s15, 0
    %p182 = por %p180, %p181
    %p183 = scmp.ne.s32.totalorder %s175, %s177
    %p184 = scmp.eq.s32.totalorder %s20, 1
    %p185 = por %p183, %p184
    %p186 = scmp.ne.s32.totalorder %s177, %s178
    %p187 = scmp.eq.s32.totalorder %s20, 0
    %p188 = por %p186, %p187
    %p189 = scmp.ne.s32.totalorder %s177, %s178
    %p190 = scmp.eq.s32.totalorder %s21, 1
    %p191 = por %p189, %p190
    %p193 = scmp.ne.s32.totalorder %s178, %s192
    %p194 = scmp.eq.s32.totalorder %s21, 0
    %p195 = por %p193, %p194
    %s197 = sadd.s32 %s196, 1
    %p200 = scmp.eq.s32.totalorder %s15, 1
    %p201 = scmp.ne.s32.totalorder %s196, %s198
    %p202 = scmp.eq.s32.totalorder %s15, 0
    %p203 = por %p201, %p202
    %p204 = scmp.ne.s32.totalorder %s196, %s198
    %p205 = scmp.eq.s32.totalorder %s20, 1
    %p206 = por %p204, %p205
    %p207 = scmp.ne.s32.totalorder %s198, %s199
    %p208 = scmp.eq.s32.totalorder %s20, 0
    %p209 = por %p207, %p208
    %p210 = scmp.ne.s32.totalorder %s198, %s199
    %p211 = scmp.eq.s32.totalorder %s21, 1
    %p212 = por %p210, %p211
    %p214 = scmp.ne.s32.totalorder %s199, %s213
    %p215 = scmp.eq.s32.totalorder %s21, 0
    %p216 = por %p214, %p215
    %s217 = ssub.s32 %s15, %s22
    %p218 = scmp.eq.s32.totalorder %s217, 0
    %s220 = sadd.s32 %s219, 1
    %s221 = scalar_select %p218, %s219, %s220
    %p224 = pneg %p218
    %p225 = scmp.eq.s32.totalorder %s15, 1
    %p226 = por %p224, %p225
    %p227 = scmp.ne.s32.totalorder %s219, %s222
    %p228 = scmp.eq.s32.totalorder %s15, 0
    %p229 = por %p227, %p228
    %p230 = scmp.ne.s32.totalorder %s219, %s222
    %p231 = scmp.eq.s32.totalorder %s20, 1
    %p232 = por %p230, %p231
    %p233 = scmp.ne.s32.totalorder %s222, %s223
    %p234 = scmp.eq.s32.totalorder %s20, 0
    %p235 = por %p233, %p234
    %p236 = scmp.ne.s32.totalorder %s222, %s223
    %p237 = scmp.eq.s32.totalorder %s21, 1
    %p238 = por %p236, %p237
    %p240 = scmp.ne.s32.totalorder %s223, %s239
    %p241 = scmp.eq.s32.totalorder %s21, 0
    %p242 = por %p240, %p241
    %p243 = scmp.le.s32.totalorder 1, %s15
    %p244 = scmp.lt.s32.totalorder %s15, 3
    %p245 = pnand %p243, %p244
    %p246 = pneg %p245
    // Predicated region
    $region9: #{tpu_custom_call.1} parent=5 // pred_check
      _
    $region10: #{tpu_custom_call.1} parent=5 // pred_check_branch
      %248 = sbr.rel (%p245) target = $region12
    $region11: #{tpu_custom_call.1} parent=5 // pred_region
      %s249 = ssub.s32 %s15, 1
      // Predicated region
      $region13: #{tpu_custom_call.1} parent=11 // pred_check
        %p250 = pneg %p62
      $region14: #{tpu_custom_call.1} parent=11 // pred_check_branch
        %252 = sbr.rel (%p250) target = $region16
      $region15: #{tpu_custom_call.1} parent=11 // pred_region
        _
      $region16: #{tpu_custom_call.1} parent=11 // pred_fallthru
        _
      // Predicated region
      $region17: #{tpu_custom_call.1} parent=11 // pred_check
        %p253 = pneg %p83
      $region18: #{tpu_custom_call.1} parent=11 // pred_check_branch
        %255 = sbr.rel (%p253) target = $region20
      $region19: #{tpu_custom_call.1} parent=11 // pred_region
        _
      $region20: #{tpu_custom_call.1} parent=11 // pred_fallthru
        _
      // Predicated region
      $region21: #{tpu_custom_call.1} parent=11 // pred_check
        %p256 = pneg %p104
      $region22: #{tpu_custom_call.1} parent=11 // pred_check_branch
        %258 = sbr.rel (%p256) target = $region24
      $region23: #{tpu_custom_call.1} parent=11 // pred_region
        _
      $region24: #{tpu_custom_call.1} parent=11 // pred_fallthru
        _
      // Predicated region
      $region25: #{tpu_custom_call.1} parent=11 // pred_check
        %p259 = pneg %p125
      $region26: #{tpu_custom_call.1} parent=11 // pred_check_branch
        %261 = sbr.rel (%p259) target = $region28
      $region27: #{tpu_custom_call.1} parent=11 // pred_region
        _
      $region28: #{tpu_custom_call.1} parent=11 // pred_fallthru
        _
      // Predicated region
      $region29: #{tpu_custom_call.1} parent=11 // pred_check
        %p262 = pneg %p146
      $region30: #{tpu_custom_call.1} parent=11 // pred_check_branch
        %264 = sbr.rel (%p262) target = $region32
      $region31: #{tpu_custom_call.1} parent=11 // pred_region
        _
      $region32: #{tpu_custom_call.1} parent=11 // pred_fallthru
        _
      // Predicated region
      $region33: #{tpu_custom_call.1} parent=11 // pred_check
        %p265 = pneg %p167
      $region34: #{tpu_custom_call.1} parent=11 // pred_check_branch
        %267 = sbr.rel (%p265) target = $region36
      $region35: #{tpu_custom_call.1} parent=11 // pred_region
        _
      $region36: #{tpu_custom_call.1} parent=11 // pred_fallthru
        _
      // Predicated region
      $region37: #{tpu_custom_call.1} parent=11 // pred_check
        %p268 = pneg %p188
      $region38: #{tpu_custom_call.1} parent=11 // pred_check_branch
        %270 = sbr.rel (%p268) target = $region40
      $region39: #{tpu_custom_call.1} parent=11 // pred_region
        _
      $region40: #{tpu_custom_call.1} parent=11 // pred_fallthru
        _
      // Predicated region
      $region41: #{tpu_custom_call.1} parent=11 // pred_check
        %p271 = pneg %p209
      $region42: #{tpu_custom_call.1} parent=11 // pred_check_branch
        %273 = sbr.rel (%p271) target = $region44
      $region43: #{tpu_custom_call.1} parent=11 // pred_region
        _
      $region44: #{tpu_custom_call.1} parent=11 // pred_fallthru
        _
    $region12: #{tpu_custom_call.1} parent=5 // pred_fallthru
      _
    %p274 = scmp.lt.s32.totalorder %s15, 2
    // Predicated region
    $region45: #{tpu_custom_call.1} parent=5 // pred_check
      %p275 = pneg %p274
    $region46: #{tpu_custom_call.1} parent=5 // pred_check_branch
      %277 = sbr.rel (%p275) target = $region48
    $region47: #{tpu_custom_call.1} parent=5 // pred_region
      // Predicated region
      $region49: #{tpu_custom_call.1} parent=47 // pred_check
        %p278 = pneg %p35
      $region50: #{tpu_custom_call.1} parent=47 // pred_check_branch
        %280 = sbr.rel (%p278) target = $region52
      $region51: #{tpu_custom_call.1} parent=47 // pred_region
        %p281 = scmp.lt.s32.totalorder %s15, 1
        %s282 = scalar_select %p281, %s15, 1
        %s283 = smul.addr %s282, 8
        %s284 = scalar_lea.vmem %s0, %s283
      $region52: #{tpu_custom_call.1} parent=47 // pred_fallthru
        _
    $region48: #{tpu_custom_call.1} parent=5 // pred_fallthru
      _
    %p285 = scmp.le.s32.totalorder 1, %s15
    %p286 = scmp.lt.s32.totalorder %s15, 3
    %p287 = pnand %p285, %p286
    %p288 = pneg %p287
    // Predicated region
    $region53: #{tpu_custom_call.1} parent=5 // pred_check
      _
    $region54: #{tpu_custom_call.1} parent=5 // pred_check_branch
      %290 = sbr.rel (%p287) target = $region56
    $region55: #{tpu_custom_call.1} parent=5 // pred_region
      %s291 = ssub.s32 %s15, 1
      %p292 = scmp.lt.s32.totalorder %s20, 1
      %s293 = scalar_select %p292, %s20, 1
      %s294 = smul.addr %s293, 8
      %s295 = scalar_lea.vmem %s0, %s294
      %p296 = pneg %p41
      %p297 = pneg %p38
      %p298 = pneg %p62
      %p299 = pneg %p59
      %p300 = pneg %p83
      %p301 = pneg %p80
      %p302 = pneg %p104
      %p303 = pneg %p101
      %p304 = pneg %p125
      %p305 = pneg %p122
      %p306 = pneg %p146
      %p307 = pneg %p143
      %p308 = pneg %p167
      %p309 = pneg %p164
      %p310 = pneg %p188
      %p311 = pneg %p185
      %p312 = pneg %p209
      %p313 = pneg %p206
      %p314 = pneg %p235
      %p315 = pneg %p232
      %p316 = scmp.lt.s32.totalorder %s20, 1
      %s317 = scalar_select %p316, %s20, 1
      %s318 = smul.addr %s317, 8
      %s319 = scalar_lea.vmem %s9, %s318
      %p320 = scmp.lt.s32.totalorder %s20, 1
      %s321 = scalar_select %p320, %s20, 1
      %s322 = smul.addr %s321, 8
      %s323 = scalar_lea.vmem %s0, %s322
      %p324 = scmp.lt.s32.totalorder %s20, 1
      %s325 = scalar_select %p324, %s20, 1
      %s326 = smul.addr %s325, 8
      %s327 = scalar_lea.vmem %s9, %s326
      %v328 = vld [vmem:[%s323] sm:$0xff]
      %v329 = vld [vmem:[%s1] sm:$0xff]
      %v330 = vld [vmem:[%s2] sm:$0x1]
      %v332 = vlaneseq
      %v333 = vshrl.u32 %v332, 7
      %v334 = vsub.s32 0, %v333
      %v335 = vrot.slane %v330, %v334
      %vm337 = vcmask 64512
      %v339 = vsel %vm337, %v328, 0
      %341 = vmatprep.subr.mxu0 0.0
      %342 = vmatpush1.msra.mxu0 %v329
      %343 = vmatprep.subr.mxu0 0.0
      %344 = vmatpush1.msra.mxu0 0.0
      %345 = vmatprep.subr.mxu0 0.0
      %346 = vmatpush1.msra.mxu0 0.0
      %347 = vmatprep.subr.mxu0 0.0
      %348 = vmatpush1.msra.mxu0 0.0
      %349 = vmatprep.subr.mxu0 0.0
      %350 = vmatpush1.msra.mxu0 0.0
      %351 = vmatprep.subr.mxu0 0.0
      %352 = vmatpush1.msra.mxu0 0.0
      %353 = vmatprep.subr.mxu0 0.0
      %354 = vmatpush1.msra.mxu0 0.0
      %355 = vmatprep.subr.mxu0 0.0
      %356 = vmatpush1.msra.mxu0 0.0
      %357 = vmatprep.subr.mxu0 0.0
      %358 = vmatpush1.msra.mxu0 0.0
      %359 = vmatprep.subr.mxu0 0.0
      %360 = vmatpush1.msra.mxu0 0.0
      %361 = vmatprep.subr.mxu0 0.0
      %362 = vmatpush1.msra.mxu0 0.0
      %363 = vmatprep.subr.mxu0 0.0
      %364 = vmatpush1.msra.mxu0 0.0
      %365 = vmatprep.subr.mxu0 0.0
      %366 = vmatpush1.msra.mxu0 0.0
      %367 = vmatprep.subr.mxu0 0.0
      %368 = vmatpush1.msra.mxu0 0.0
      %369 = vmatprep.subr.mxu0 0.0
      %370 = vmatpush1.msra.mxu0 0.0
      %371 = vmatprep.subr.mxu0 0.0
      %372 = vmatpush1.msra.mxu0 0.0
      %373 = vmatprep.subr.mxu0 0.0
      %374 = vmatpush1.msra.mxu0 0.0
      %375 = vmatprep.subr.mxu0 0.0
      %376 = vmatpush1.msra.mxu0 0.0
      %377 = vmatprep.subr.mxu0 0.0
      %378 = vmatpush1.msra.mxu0 0.0
      %379 = vmatprep.subr.mxu0 0.0
      %380 = vmatpush1.msra.mxu0 0.0
      %381 = vmatprep.subr.mxu0 0.0
      %382 = vmatpush1.msra.mxu0 0.0
      %383 = vmatprep.subr.mxu0 0.0
      %384 = vmatpush1.msra.mxu0 0.0
      %385 = vmatprep.subr.mxu0 0.0
      %386 = vmatpush1.msra.mxu0 0.0
      %387 = vmatprep.subr.mxu0 0.0
      %388 = vmatpush1.msra.mxu0 0.0
      %389 = vmatprep.subr.mxu0 0.0
      %390 = vmatpush1.msra.mxu0 0.0
      %391 = vmatprep.subr.mxu0 0.0
      %392 = vmatpush1.msra.mxu0 0.0
      %393 = vmatprep.subr.mxu0 0.0
      %394 = vmatpush1.msra.mxu0 0.0
      %395 = vmatprep.subr.mxu0 0.0
      %396 = vmatpush1.msra.mxu0 0.0
      %397 = vmatprep.subr.mxu0 0.0
      %398 = vmatpush1.msra.mxu0 0.0
      %399 = vmatprep.subr.mxu0 0.0
      %400 = vmatpush1.msra.mxu0 0.0
      %401 = vmatprep.subr.mxu0 0.0
      %402 = vmatpush1.msra.mxu0 0.0
      %403 = vmatprep.subr.mxu0 0.0
      %404 = vmatpush1.msra.mxu0 0.0
      %405 = vmatprep.mubr.f32.mxu0 0.0
      %406 = vmatmul.mubr.f32.gmra.mrb[0].mxu0 %v339
      %v407 = vpop.f32.mrb[0].mxu0
      %v408 = vadd.f32 %v335, %v407
      %v409 = vpop.f32.mrb[0].mxu0
      %410 = vdwg.mxu0
      %v411 = vmax.f32 %v408, 0.0
      %v412 = vld [vmem:[%s3] sm:$0xff]
      %v413 = vld [vmem:[%s3 + $0x8] sm:$0xff]
      %v414 = vld [vmem:[%s3 + $0x10] sm:$0xff]
      %v415 = vld [vmem:[%s3 + $0x18] sm:$0xff]
      %v416 = vld [vmem:[%s4] sm:$0x1]
      %v418 = vlaneseq
      %v419 = vshrl.u32 %v418, 7
      %v420 = vsub.s32 0, %v419
      %v421 = vrot.slane %v416, %v420
      %vm423 = vcmask 261120
      %v425 = vsel %vm423, %v411, 0
      %427 = vmatprep.subr.mxu0 0.0
      %428 = vmatpush1.msra.mxu0 %v412
      %429 = vmatprep.subr.mxu0 0.0
      %430 = vmatpush1.msra.mxu0 %v413
      %431 = vmatprep.subr.mxu0 0.0
      %432 = vmatpush1.msra.mxu0 %v414
      %433 = vmatprep.subr.mxu0 0.0
      %434 = vmatpush1.msra.mxu0 %v415
      %435 = vmatprep.subr.mxu0 0.0
      %436 = vmatpush1.msra.mxu0 0.0
      %437 = vmatprep.subr.mxu0 0.0
      %438 = vmatpush1.msra.mxu0 0.0
      %439 = vmatprep.subr.mxu0 0.0
      %440 = vmatpush1.msra.mxu0 0.0
      %441 = vmatprep.subr.mxu0 0.0
      %442 = vmatpush1.msra.mxu0 0.0
      %443 = vmatprep.subr.mxu0 0.0
      %444 = vmatpush1.msra.mxu0 0.0
      %445 = vmatprep.subr.mxu0 0.0
      %446 = vmatpush1.msra.mxu0 0.0
      %447 = vmatprep.subr.mxu0 0.0
      %448 = vmatpush1.msra.mxu0 0.0
      %449 = vmatprep.subr.mxu0 0.0
      %450 = vmatpush1.msra.mxu0 0.0
      %451 = vmatprep.subr.mxu0 0.0
      %452 = vmatpush1.msra.mxu0 0.0
      %453 = vmatprep.subr.mxu0 0.0
      %454 = vmatpush1.msra.mxu0 0.0
      %455 = vmatprep.subr.mxu0 0.0
      %456 = vmatpush1.msra.mxu0 0.0
      %457 = vmatprep.subr.mxu0 0.0
      %458 = vmatpush1.msra.mxu0 0.0
      %459 = vmatprep.subr.mxu0 0.0
      %460 = vmatpush1.msra.mxu0 0.0
      %461 = vmatprep.subr.mxu0 0.0
      %462 = vmatpush1.msra.mxu0 0.0
      %463 = vmatprep.subr.mxu0 0.0
      %464 = vmatpush1.msra.mxu0 0.0
      %465 = vmatprep.subr.mxu0 0.0
      %466 = vmatpush1.msra.mxu0 0.0
      %467 = vmatprep.subr.mxu0 0.0
      %468 = vmatpush1.msra.mxu0 0.0
      %469 = vmatprep.subr.mxu0 0.0
      %470 = vmatpush1.msra.mxu0 0.0
      %471 = vmatprep.subr.mxu0 0.0
      %472 = vmatpush1.msra.mxu0 0.0
      %473 = vmatprep.subr.mxu0 0.0
      %474 = vmatpush1.msra.mxu0 0.0
      %475 = vmatprep.subr.mxu0 0.0
      %476 = vmatpush1.msra.mxu0 0.0
      %477 = vmatprep.subr.mxu0 0.0
      %478 = vmatpush1.msra.mxu0 0.0
      %479 = vmatprep.subr.mxu0 0.0
      %480 = vmatpush1.msra.mxu0 0.0
      %481 = vmatprep.subr.mxu0 0.0
      %482 = vmatpush1.msra.mxu0 0.0
      %483 = vmatprep.subr.mxu0 0.0
      %484 = vmatpush1.msra.mxu0 0.0
      %485 = vmatprep.subr.mxu0 0.0
      %486 = vmatpush1.msra.mxu0 0.0
      %487 = vmatprep.subr.mxu0 0.0
      %488 = vmatpush1.msra.mxu0 0.0
      %489 = vmatprep.subr.mxu0 0.0
      %490 = vmatpush1.msra.mxu0 0.0
      %491 = vmatprep.mubr.f32.mxu0 0.0
      %492 = vmatmul.mubr.f32.gmra.mrb[0].mxu0 %v425
      %v493 = vpop.f32.mrb[0].mxu0
      %v494 = vadd.f32 %v421, %v493
      %v495 = vpop.f32.mrb[0].mxu0
      %496 = vdwg.mxu0
      %v497 = vmax.f32 %v494, 0.0
      %v498 = vld [vmem:[%s5] sm:$0xff]
      %v499 = vld [vmem:[%s5 + $0x8] sm:$0xff]
      %v500 = vld [vmem:[%s5 + $0x10] sm:$0xff]
      %v501 = vld [vmem:[%s5 + $0x18] sm:$0xff]
      %v502 = vld [vmem:[%s6] sm:$0x1]
      %v504 = vlaneseq
      %v505 = vshrl.u32 %v504, 7
      %v506 = vsub.s32 0, %v505
      %v507 = vrot.slane %v502, %v506
      %v510 = vsel %vm423, %v497, 0
      %512 = vmatprep.subr.mxu0 0.0
      %513 = vmatpush1.msra.mxu0 %v498
      %514 = vmatprep.subr.mxu0 0.0
      %515 = vmatpush1.msra.mxu0 %v499
      %516 = vmatprep.subr.mxu0 0.0
      %517 = vmatpush1.msra.mxu0 %v500
      %518 = vmatprep.subr.mxu0 0.0
      %519 = vmatpush1.msra.mxu0 %v501
      %520 = vmatprep.subr.mxu0 0.0
      %521 = vmatpush1.msra.mxu0 0.0
      %522 = vmatprep.subr.mxu0 0.0
      %523 = vmatpush1.msra.mxu0 0.0
      %524 = vmatprep.subr.mxu0 0.0
      %525 = vmatpush1.msra.mxu0 0.0
      %526 = vmatprep.subr.mxu0 0.0
      %527 = vmatpush1.msra.mxu0 0.0
      %528 = vmatprep.subr.mxu0 0.0
      %529 = vmatpush1.msra.mxu0 0.0
      %530 = vmatprep.subr.mxu0 0.0
      %531 = vmatpush1.msra.mxu0 0.0
      %532 = vmatprep.subr.mxu0 0.0
      %533 = vmatpush1.msra.mxu0 0.0
      %534 = vmatprep.subr.mxu0 0.0
      %535 = vmatpush1.msra.mxu0 0.0
      %536 = vmatprep.subr.mxu0 0.0
      %537 = vmatpush1.msra.mxu0 0.0
      %538 = vmatprep.subr.mxu0 0.0
      %539 = vmatpush1.msra.mxu0 0.0
      %540 = vmatprep.subr.mxu0 0.0
      %541 = vmatpush1.msra.mxu0 0.0
      %542 = vmatprep.subr.mxu0 0.0
      %543 = vmatpush1.msra.mxu0 0.0
      %544 = vmatprep.subr.mxu0 0.0
      %545 = vmatpush1.msra.mxu0 0.0
      %546 = vmatprep.subr.mxu0 0.0
      %547 = vmatpush1.msra.mxu0 0.0
      %548 = vmatprep.subr.mxu0 0.0
      %549 = vmatpush1.msra.mxu0 0.0
      %550 = vmatprep.subr.mxu0 0.0
      %551 = vmatpush1.msra.mxu0 0.0
      %552 = vmatprep.subr.mxu0 0.0
      %553 = vmatpush1.msra.mxu0 0.0
      %554 = vmatprep.subr.mxu0 0.0
      %555 = vmatpush1.msra.mxu0 0.0
      %556 = vmatprep.subr.mxu0 0.0
      %557 = vmatpush1.msra.mxu0 0.0
      %558 = vmatprep.subr.mxu0 0.0
      %559 = vmatpush1.msra.mxu0 0.0
      %560 = vmatprep.subr.mxu0 0.0
      %561 = vmatpush1.msra.mxu0 0.0
      %562 = vmatprep.subr.mxu0 0.0
      %563 = vmatpush1.msra.mxu0 0.0
      %564 = vmatprep.subr.mxu0 0.0
      %565 = vmatpush1.msra.mxu0 0.0
      %566 = vmatprep.subr.mxu0 0.0
      %567 = vmatpush1.msra.mxu0 0.0
      %568 = vmatprep.subr.mxu0 0.0
      %569 = vmatpush1.msra.mxu0 0.0
      %570 = vmatprep.subr.mxu0 0.0
      %571 = vmatpush1.msra.mxu0 0.0
      %572 = vmatprep.subr.mxu0 0.0
      %573 = vmatpush1.msra.mxu0 0.0
      %574 = vmatprep.subr.mxu0 0.0
      %575 = vmatpush1.msra.mxu0 0.0
      %576 = vmatprep.mubr.f32.mxu0 0.0
      %577 = vmatmul.mubr.f32.gmra.mrb[0].mxu0 %v510
      %v578 = vpop.f32.mrb[0].mxu0
      %v579 = vadd.f32 %v507, %v578
      %v580 = vpop.f32.mrb[0].mxu0
      %581 = vdwg.mxu0
      %v582 = vmax.f32 %v579, 0.0
      %v583 = vld [vmem:[%s7] sm:$0xff]
      %v584 = vld [vmem:[%s7 + $0x8] sm:$0xff]
      %v585 = vld [vmem:[%s8] sm:$0x1]
      %v587 = vlaneseq
      %v588 = vshrl.u32 %v587, 7
      %v589 = vsub.s32 0, %v588
      %v590 = vrot.slane %v585, %v589
      %vm592 = vcmask 130048
      %v594 = vsel %vm592, %v582, 0
      %596 = vmatprep.subr.mxu0 0.0
      %597 = vmatpush1.msra.mxu0 %v583
      %598 = vmatprep.subr.mxu0 0.0
      %599 = vmatpush1.msra.mxu0 %v584
      %600 = vmatprep.subr.mxu0 0.0
      %601 = vmatpush1.msra.mxu0 0.0
      %602 = vmatprep.subr.mxu0 0.0
      %603 = vmatpush1.msra.mxu0 0.0
      %604 = vmatprep.subr.mxu0 0.0
      %605 = vmatpush1.msra.mxu0 0.0
      %606 = vmatprep.subr.mxu0 0.0
      %607 = vmatpush1.msra.mxu0 0.0
      %608 = vmatprep.subr.mxu0 0.0
      %609 = vmatpush1.msra.mxu0 0.0
      %610 = vmatprep.subr.mxu0 0.0
      %611 = vmatpush1.msra.mxu0 0.0
      %612 = vmatprep.subr.mxu0 0.0
      %613 = vmatpush1.msra.mxu0 0.0
      %614 = vmatprep.subr.mxu0 0.0
      %615 = vmatpush1.msra.mxu0 0.0
      %616 = vmatprep.subr.mxu0 0.0
      %617 = vmatpush1.msra.mxu0 0.0
      %618 = vmatprep.subr.mxu0 0.0
      %619 = vmatpush1.msra.mxu0 0.0
      %620 = vmatprep.subr.mxu0 0.0
      %621 = vmatpush1.msra.mxu0 0.0
      %622 = vmatprep.subr.mxu0 0.0
      %623 = vmatpush1.msra.mxu0 0.0
      %624 = vmatprep.subr.mxu0 0.0
      %625 = vmatpush1.msra.mxu0 0.0
      %626 = vmatprep.subr.mxu0 0.0
      %627 = vmatpush1.msra.mxu0 0.0
      %628 = vmatprep.subr.mxu0 0.0
      %629 = vmatpush1.msra.mxu0 0.0
      %630 = vmatprep.subr.mxu0 0.0
      %631 = vmatpush1.msra.mxu0 0.0
      %632 = vmatprep.subr.mxu0 0.0
      %633 = vmatpush1.msra.mxu0 0.0
      %634 = vmatprep.subr.mxu0 0.0
      %635 = vmatpush1.msra.mxu0 0.0
      %636 = vmatprep.subr.mxu0 0.0
      %637 = vmatpush1.msra.mxu0 0.0
      %638 = vmatprep.subr.mxu0 0.0
      %639 = vmatpush1.msra.mxu0 0.0
      %640 = vmatprep.subr.mxu0 0.0
      %641 = vmatpush1.msra.mxu0 0.0
      %642 = vmatprep.subr.mxu0 0.0
      %643 = vmatpush1.msra.mxu0 0.0
      %644 = vmatprep.subr.mxu0 0.0
      %645 = vmatpush1.msra.mxu0 0.0
      %646 = vmatprep.subr.mxu0 0.0
      %647 = vmatpush1.msra.mxu0 0.0
      %648 = vmatprep.subr.mxu0 0.0
      %649 = vmatpush1.msra.mxu0 0.0
      %650 = vmatprep.subr.mxu0 0.0
      %651 = vmatpush1.msra.mxu0 0.0
      %652 = vmatprep.subr.mxu0 0.0
      %653 = vmatpush1.msra.mxu0 0.0
      %654 = vmatprep.subr.mxu0 0.0
      %655 = vmatpush1.msra.mxu0 0.0
      %656 = vmatprep.subr.mxu0 0.0
      %657 = vmatpush1.msra.mxu0 0.0
      %658 = vmatprep.subr.mxu0 0.0
      %659 = vmatpush1.msra.mxu0 0.0
      %660 = vmatprep.mubr.f32.mxu0 0.0
      %661 = vmatmul.mubr.f32.gmra.mrb[0].mxu0 %v594
      %v662 = vpop.f32.mrb[0].mxu0
      %v663 = vadd.f32 %v590, %v662
      %v664 = vpop.f32.mrb[0].mxu0
      %665 = vdwg.mxu0
      %vm666 = vcmask 31744
      %667 = vst.msk [vmem:[%s327] sm:$0xff] %vm666, %v663
      %p668 = scmp.lt.s32.totalorder %s20, 1
      %s669 = scalar_select %p668, %s20, 1
      %s670 = smul.addr %s669, 8
      %s671 = scalar_lea.vmem %s9, %s670
      // Predicated region
      $region57: #{tpu_custom_call.1} parent=55 // pred_check
        %p672 = pneg %p232
      $region58: #{tpu_custom_call.1} parent=55 // pred_check_branch
        %674 = sbr.rel (%p672) target = $region60
      $region59: #{tpu_custom_call.1} parent=55 // pred_region
        _
      $region60: #{tpu_custom_call.1} parent=55 // pred_fallthru
        _
    $region56: #{tpu_custom_call.1} parent=5 // pred_fallthru
      _
    %p675 = scmp.le.s32.totalorder 2, %s15
    // Predicated region
    $region61: #{tpu_custom_call.1} parent=5 // pred_check
      %p676 = pneg %p675
    $region62: #{tpu_custom_call.1} parent=5 // pred_check_branch
      %678 = sbr.rel (%p676) target = $region64
    $region63: #{tpu_custom_call.1} parent=5 // pred_region
      %s679 = ssub.s32 %s15, 2
      // Predicated region
      $region65: #{tpu_custom_call.1} parent=63 // pred_check
        %p680 = pneg %p238
      $region66: #{tpu_custom_call.1} parent=63 // pred_check_branch
        %682 = sbr.rel (%p680) target = $region68
      $region67: #{tpu_custom_call.1} parent=63 // pred_region
        %p683 = scmp.lt.s32.totalorder %s21, 1
        %s684 = scalar_select %p683, %s21, 1
        %s685 = smul.addr %s684, 8
        %s686 = scalar_lea.vmem %s9, %s685
      $region68: #{tpu_custom_call.1} parent=63 // pred_fallthru
        _
    $region64: #{tpu_custom_call.1} parent=5 // pred_fallthru
      _
  $region6: #{tpu_custom_call.1} parent=0 // loop_footer
    %s19 = sadd.s32 1, %s15
  $region7: #{tpu_custom_call.1} parent=0 // loop_footer_branch
    %14 = sbr.rel target = $region3
  $region8: #{tpu_custom_call.1} parent=0 // loop_exit
    _

</llo_original>
